<compile_context>
chip_gen: v5e
topology: v5e:2x2
jax: 0.10.0
libtpu: 0.0.40
codegen_flags: <defaults>
</compile_context>

<pallas_src>
import math
import functools

import jax
import jax.numpy as jnp
from jax.experimental import pallas as pl
from jax.experimental.pallas import tpu as pltpu


_INV_SQRT2 = 1.0 / math.sqrt(2.0)

# ~2 MiB per block; with input + output double-buffered that is ~8 MiB of live
# VMEM -- inside the scoped VMEM budget on every generation (incl. v7x).
_TARGET_BLOCK_BYTES = 2 * 1024 * 1024
# Above this total size, force >= 2 blocks so the v7x megacore can split work.
_MIN_MEGACORE_BYTES = 1 * 1024 * 1024

# Abramowitz & Stegun 7.1.26 erf approximation coefficients (|err| <= 1.5e-7).
_AS_P = 0.3275911
_AS_A1 = 0.254829592
_AS_A2 = -0.284496736
_AS_A3 = 1.421413741
_AS_A4 = -1.453152027
_AS_A5 = 1.061405429


def _cdiv(a: int, b: int) -> int:
    return -(-a // b)


def _erf_eup(z):
    """erf(z) via A&S 7.1.26: exp + reciprocal run on the EUP slot,
    keeping the VALU free.  Max abs error ~1.5e-7."""
    az = jnp.abs(z)
    t = 1.0 / (1.0 + _AS_P * az)                       # EUP reciprocal (+ refine)
    poly = t * (_AS_A1 + t * (_AS_A2 + t * (_AS_A3 + t * (_AS_A4 + t * _AS_A5))))
    e = 1.0 - poly * jnp.exp(-az * az)                 # EUP exp
    return jnp.where(z < 0, -e, e)


def _clipped_gelu_kernel(x_ref, o_ref, *, min_val, max_val, use_eup_erf):
    # exact/approx erf GELU in f32, clip, cast back to I/O dtype
    xf = x_ref[...].astype(jnp.float32)
    z = xf * _INV_SQRT2
    erf_z = _erf_eup(z) if use_eup_erf else jax.lax.erf(z)
    gelu = 0.5 * xf * (1.0 + erf_z)
    o_ref[...] = jnp.clip(gelu, min_val, max_val).astype(o_ref.dtype)


def _gelu_clip_jnp(x, min_val, max_val):
    """Plain-jnp epilogue for the <128-element ragged tail (exact erf)."""
    xf = x.astype(jnp.float32)
    g = 0.5 * xf * (1.0 + jax.lax.erf(xf * _INV_SQRT2))
    return jnp.clip(g, min_val, max_val).astype(x.dtype)


def _choose_lane_width(n_aligned: int) -> int:
    """Widest lane-dense last dim dividing n_aligned (n_aligned % 128 == 0)."""
    for w in (1024, 512, 256, 128):
        if n_aligned % w == 0:
            return w
    return 128  # unreachable: n_aligned is always a multiple of 128


def _choose_tiling(rows: int, lane_w: int, itemsize: int, sub_pack: int):
    """Pick (tile_rows, n_blocks).  Blocks are ~_TARGET_BLOCK_BYTES, sublane-
    packed, and (for > ~1 MiB tensors) there are >= 2, preferably an even
    number of, balanced blocks so both v7x TensorCores get work."""
    row_bytes = lane_w * itemsize
    total_bytes = rows * row_bytes

    if total_bytes <= _MIN_MEGACORE_BYTES or rows < 2 * sub_pack:
        return rows, 1  # single full-extent block (allowed even if rows % 8 != 0)

    target_rows = max(sub_pack,
                      (_TARGET_BLOCK_BYTES // row_bytes) // sub_pack * sub_pack)
    n_blocks = max(2, _cdiv(rows, target_rows))
    if n_blocks % 2:
        n_blocks += 1                       # even block count -> balanced TCs
    tile_rows = max(sub_pack, _cdiv(_cdiv(rows, n_blocks), sub_pack) * sub_pack)
    tile_rows = min(tile_rows, rows)
    n_blocks = _cdiv(rows, tile_rows)       # ragged last block handled by Pallas
    return tile_rows, n_blocks


def clipped_gelu(x, min_val: float, max_val: float, *, use_eup_erf: bool = True):
    """Apply clip(gelu(x), min_val, max_val) via a Pallas TPU kernel.

    Works for any shape/dtype; internally flattens to a lane-dense 2-D
    (rows, lane_width) view with ~2 MiB blocks.  A <128-element ragged tail
    (if any) is handled by a tiny plain-jnp epilogue so the aligned bulk never
    pays a pad/slice HBM round trip.
    """
    if min_val > max_val:
        raise ValueError(f"min should be < max (got min: {min_val}, max: {max_val})")

    orig_shape = x.shape
    orig_dtype = x.dtype
    n = x.size
    if n == 0:
        return x

    itemsize = jnp.dtype(orig_dtype).itemsize
    sub_pack = max(8, 32 // itemsize)  # native sublane pack: 8 f32 / 16 bf16 / 32 int8

    rem = n % 128
    n_main = n - rem

    # Split off the (at most 127-element) tail; no whole-tensor pad/slice.
    if rem == 0:
        x_main, x_tail = x, None
    else:
        x_flat = jnp.reshape(x, (-1,))
        x_main, x_tail = x_flat[:n_main], x_flat[n_main:]

    tail_out = None
    if x_tail is not None:
        tail_out = _gelu_clip_jnp(x_tail, min_val, max_val)

    if n_main == 0:
        # Entire tensor is smaller than one 128-lane row; plain jnp is optimal.
        return jnp.reshape(tail_out, orig_shape)

    lane_w = _choose_lane_width(n_main)
    rows = n_main // lane_w
    x2d = jnp.reshape(x_main, (rows, lane_w))

    tile_rows, n_blocks = _choose_tiling(rows, lane_w, itemsize, sub_pack)

    kernel = functools.partial(
        _clipped_gelu_kernel,
        min_val=float(min_val),
        max_val=float(max_val),
        use_eup_erf=use_eup_erf,
    )

    # erf does not lower to a TPU transcendental; the EUP path uses exp + rcp.
    cost = pl.CostEstimate(
        flops=25 * n_main,
        transcendentals=(2 * n_main) if use_eup_erf else 0,
        bytes_accessed=2 * n_main * itemsize,
    )

    out2d = pl.pallas_call(
        kernel,
        out_shape=jax.ShapeDtypeStruct((rows, lane_w), orig_dtype),
        grid=(n_blocks,),
        in_specs=[pl.BlockSpec((tile_rows, lane_w), lambda i: (i, 0))],
        out_specs=pl.BlockSpec((tile_rows, lane_w), lambda i: (i, 0)),
        compiler_params=pltpu.CompilerParams(
            dimension_semantics=("parallel",),
            vmem_limit_bytes=32 * 1024 * 1024,
        ),
        cost_estimate=cost,
    )(x2d)

    if x_tail is None:
        return jnp.reshape(out2d, orig_shape)
    out_flat = jnp.concatenate([jnp.reshape(out2d, (-1,)), tail_out])
    return jnp.reshape(out_flat, orig_shape)


def _reference(x, min_val, max_val):
    xf = x.astype(jnp.float32)
    g = 0.5 * xf * (1.0 + jax.lax.erf(xf * _INV_SQRT2))
    return jnp.clip(g, min_val, max_val).astype(x.dtype)


if __name__ == "__main__":
    key = jax.random.PRNGKey(0)
    # small NCHW-style activation tensor, consistent with a conv/transformer activation
    x = jax.random.normal(key, (2, 4, 16, 16), dtype=jnp.float32) * 3.0

    MIN, MAX = -0.5, 2.0  # ClippedGELUActivation(min=-0.5, max=2.0)

    # default (EUP-offloaded erf) path
    y = jax.block_until_ready(clipped_gelu(x, MIN, MAX))
    y_ref = _reference(x, MIN, MAX)
    assert y.shape == x.shape and y.dtype == x.dtype
    assert jnp.allclose(y, y_ref, atol=1e-5, rtol=1e-5), "mismatch vs reference (eup erf)"

    # exact lax.erf path (bit-level torch parity)
    y_exact = jax.block_until_ready(clipped_gelu(x, MIN, MAX, use_eup_erf=False))
    assert jnp.allclose(y_exact, y_ref, atol=1e-6, rtol=1e-6), "mismatch vs reference (exact erf)"

    # ragged path: total elements < 128 (pure tail epilogue)
    x2 = jax.random.normal(jax.random.PRNGKey(1), (3, 5, 7), dtype=jnp.float32) * 2.0
    y2 = jax.block_until_ready(clipped_gelu(x2, MIN, MAX))
    assert jnp.allclose(y2, _reference(x2, MIN, MAX), atol=1e-5, rtol=1e-5)

    # ragged path: 128-aligned prefix (kernel) + <128-element tail (epilogue)
    x3 = jax.random.normal(jax.random.PRNGKey(2), (5, 300), dtype=jnp.float32) * 3.0
    y3 = jax.block_until_ready(clipped_gelu(x3, MIN, MAX))
    assert jnp.allclose(y3, _reference(x3, MIN, MAX), atol=1e-5, rtol=1e-5)

    print("KERNEL_OK")
</pallas_src>

<mosaic_0001>
module attributes {stable_mosaic.version = 11 : i64} {
  func.func @_clipped_gelu_kernel(%arg0: i32, %arg1: memref<2x1024xf32, #tpu.memory_space<vmem>>, %arg2: memref<2x1024xf32, #tpu.memory_space<vmem>>) attributes {dimension_semantics = [#tpu.dimension_semantics<parallel>], iteration_bounds = array<i64: 1>, scalar_prefetch = 0 : i64, scratch_operands = 0 : i64, tpu.core_type = #tpu.core_type<tc>, window_params = [{transform_indices = @transform_0, window_bounds = array<i64: 2, 1024>}, {transform_indices = @transform_1, window_bounds = array<i64: 2, 1024>}]} {
    %c0 = arith.constant 0 : index
    %c0_0 = arith.constant 0 : index
    %0 = vector.load %arg1[%c0, %c0_0] : memref<2x1024xf32, #tpu.memory_space<vmem>>, vector<2x1024xf32>
    %cst = arith.constant 0.707106769 : f32
    %1 = vector.broadcast %cst : f32 to vector<2x1024xf32>
    %2 = arith.mulf %0, %1 : vector<2x1024xf32>
    %3 = math.absf %2 : vector<2x1024xf32>
    %cst_1 = arith.constant 0.327591091 : f32
    %4 = vector.broadcast %cst_1 : f32 to vector<2x1024xf32>
    %5 = arith.mulf %4, %3 : vector<2x1024xf32>
    %cst_2 = arith.constant 1.000000e+00 : f32
    %6 = vector.broadcast %cst_2 : f32 to vector<2x1024xf32>
    %7 = arith.addf %6, %5 : vector<2x1024xf32>
    %cst_3 = arith.constant 1.000000e+00 : f32
    %8 = vector.broadcast %cst_3 : f32 to vector<2x1024xf32>
    %9 = arith.divf %8, %7 : vector<2x1024xf32>
    %cst_4 = arith.constant 1.06140542 : f32
    %10 = vector.broadcast %cst_4 : f32 to vector<2x1024xf32>
    %11 = arith.mulf %9, %10 : vector<2x1024xf32>
    %cst_5 = arith.constant -1.45315206 : f32
    %12 = vector.broadcast %cst_5 : f32 to vector<2x1024xf32>
    %13 = arith.addf %12, %11 : vector<2x1024xf32>
    %14 = arith.mulf %9, %13 : vector<2x1024xf32>
    %cst_6 = arith.constant 1.42141378 : f32
    %15 = vector.broadcast %cst_6 : f32 to vector<2x1024xf32>
    %16 = arith.addf %15, %14 : vector<2x1024xf32>
    %17 = arith.mulf %9, %16 : vector<2x1024xf32>
    %cst_7 = arith.constant -0.284496725 : f32
    %18 = vector.broadcast %cst_7 : f32 to vector<2x1024xf32>
    %19 = arith.addf %18, %17 : vector<2x1024xf32>
    %20 = arith.mulf %9, %19 : vector<2x1024xf32>
    %cst_8 = arith.constant 0.254829586 : f32
    %21 = vector.broadcast %cst_8 : f32 to vector<2x1024xf32>
    %22 = arith.addf %21, %20 : vector<2x1024xf32>
    %23 = arith.mulf %9, %22 : vector<2x1024xf32>
    %cst_9 = arith.constant 0.000000e+00 : f32
    %24 = vector.broadcast %cst_9 : f32 to vector<2x1024xf32>
    %25 = arith.subf %24, %3 : vector<2x1024xf32>
    %26 = arith.mulf %25, %3 : vector<2x1024xf32>
    %27 = math.exp %26 : vector<2x1024xf32>
    %28 = arith.mulf %23, %27 : vector<2x1024xf32>
    %cst_10 = arith.constant 1.000000e+00 : f32
    %29 = vector.broadcast %cst_10 : f32 to vector<2x1024xf32>
    %30 = arith.subf %29, %28 : vector<2x1024xf32>
    %cst_11 = arith.constant 0.000000e+00 : f32
    %31 = vector.broadcast %cst_11 : f32 to vector<2x1024xf32>
    %32 = arith.cmpf olt, %2, %31 : vector<2x1024xf32>
    %cst_12 = arith.constant 0.000000e+00 : f32
    %33 = vector.broadcast %cst_12 : f32 to vector<2x1024xf32>
    %34 = arith.subf %33, %30 : vector<2x1024xf32>
    %35 = arith.select %32, %34, %30 : vector<2x1024xi1>, vector<2x1024xf32>
    %cst_13 = arith.constant 5.000000e-01 : f32
    %36 = vector.broadcast %cst_13 : f32 to vector<2x1024xf32>
    %37 = arith.mulf %36, %0 : vector<2x1024xf32>
    %cst_14 = arith.constant 1.000000e+00 : f32
    %38 = vector.broadcast %cst_14 : f32 to vector<2x1024xf32>
    %39 = arith.addf %38, %35 : vector<2x1024xf32>
    %40 = arith.mulf %37, %39 : vector<2x1024xf32>
    %cst_15 = arith.constant -5.000000e-01 : f32
    %cst_16 = arith.constant 2.000000e+00 : f32
    %41 = vector.broadcast %cst_15 : f32 to vector<2x1024xf32>
    %42 = arith.maximumf %41, %40 : vector<2x1024xf32>
    %43 = vector.broadcast %cst_16 : f32 to vector<2x1024xf32>
    %44 = arith.minimumf %43, %42 : vector<2x1024xf32>
    %c0_17 = arith.constant 0 : index
    %c0_18 = arith.constant 0 : index
    %45 = vector.load %arg2[%c0_17, %c0_18] : memref<2x1024xf32, #tpu.memory_space<vmem>>, vector<2x1024xf32>
    tpu.vector_store %arg2[%c0_17, %c0_18], %44 {strides = array<i32>} : memref<2x1024xf32, #tpu.memory_space<vmem>>, vector<2x1024xf32>,
    return
  }
  func.func @transform_0(%arg0: i32) -> (i32, i32) {
    %c0_i32 = arith.constant 0 : i32
    %c0_i32_0 = arith.constant 0 : i32
    return %arg0, %c0_i32 : i32, i32
  }
  func.func @transform_1(%arg0: i32) -> (i32, i32) {
    %c0_i32 = arith.constant 0 : i32
    %c0_i32_0 = arith.constant 0 : i32
    return %arg0, %c0_i32 : i32, i32
  }
}

</mosaic_0001>

<llo_original>
// kernel: tpu_custom_call.1
$region0: #{tpu_custom_call.1}
  #allocation0 [shape = 'u32[]', space=smem, size = 0x4, offset = 0x4, fixed_abs, tag = 'smem constant byte address 0x4 - core index']
  #allocation1 [shape = 'u32[72,128]{1,0:T(1,128)}', space=vmem, size = 0x9000, scoped, tag = 'internal scratch']
  %s0 = inlined_call_operand.hbm [shape: f32[2,1024], index: 0, kind: input, shape index: {}]
  %s1 = inlined_call_operand.hbm [shape: f32[2,1024], index: 1, kind: output, shape index: {}]
  %s2 = sld [smem:[#allocation0]]
  $region18: #{tpu_custom_call.1} parent=0
    _
  %s4 = ssub.s32 1, %s2
  %s5 = scalar_select 0, %s4, %s2
  $region1: #{tpu_custom_call.1} parent=0
    #allocation2 [shape = 'u8[8192]{0}', space=vmem, size = 0x2000, scoped, tag = 'input window, operand 0, single buffered']
    #allocation3 [shape = 's32[1]{0}', space=sflag, size = 0x4, scoped, tag = 'scoped memory for tpu_custom_call.1']
    #allocation4 [shape = 's32[1]{0}', space=sflag, size = 0x4, scoped, tag = 'scoped memory for tpu_custom_call.1']
    #allocation5 [shape = 'u8[8192]{0}', space=vmem, size = 0x2000, scoped, tag = 'output window, operand 0, single buffered']
    %6 = vsyncpa [#allocation3], 0
    %7 = vsyncpa [#allocation4], 0
    // Predicated region
    $region2: #{tpu_custom_call.1} parent=1 // pred_check
      _
    $region3: #{tpu_custom_call.1} parent=1 // pred_check_branch
      %9 = sbr.rel (0) target = $region5
    $region4: #{tpu_custom_call.1} parent=1 // pred_region
      %11 = vsyncadd [#allocation3], 0
      %s13 = sshll.u32 %s0, 4
      %s14 = int_to_ptr.hbm [resolvable:$true] %s13
      %s15 = sshll.u32 [#allocation2], 4
      %s16 = int_to_ptr.vmem [resolvable:$true] %s15
      %18 = dma.hbm_to_vmem [thread:$0]  %s14, 256, %s16, [#allocation3]
    $region5: #{tpu_custom_call.1} parent=1 // pred_fallthru
      _
    // Predicated region
    $region6: #{tpu_custom_call.1} parent=1 // pred_check
      _
    $region7: #{tpu_custom_call.1} parent=1 // pred_check_branch
      %20 = sbr.rel (0) target = $region9
    $region8: #{tpu_custom_call.1} parent=1 // pred_region
      %22 = dma.done [#allocation3], 256
    $region9: #{tpu_custom_call.1} parent=1 // pred_fallthru
      _
    %v23 = vld [vmem:[#allocation2] sm:$0xff]
    %v24 = vld [vmem:[#allocation2 + $0x8] sm:$0xff]
    %v25 = vmul.f32 %v23, 0.70710677
    %v26 = vmul.f32 %v24, 0.70710677
    %v27 = vand.u32 2147483647, %v25
    %v28 = vand.u32 2147483647, %v26
    %v29 = vmul.f32 %v27, 0.3275911
    %v30 = vmul.f32 %v28, 0.3275911
    %v31 = vadd.f32 %v29, 1.0
    %v32 = vadd.f32 %v30, 1.0
    %v33 = vrcp.pop %v31
    %v34 = vmul.f32 %v31, %v33
    %v35 = vsub.f32 1.0, %v34
    %v36 = vmul.f32 %v33, %v35
    %v37 = vadd.f32 %v33, %v36
    %vm38 = vweird.f32 %v31
    %vm39 = vweird.f32 %v33
    %vm40 = vmor %vm38, %vm39
    %v41 = vsel %vm40, %v33, %v37
    %v42 = vand.u32 2147483647, %v31
    %vm43 = vcmp.eq.f32.partialorder %v42, 8.507059e+37
    %v44 = vand.u32 %v31, 2147483648
    %v45 = vor.u32 1.1754944e-38, %v44
    %v46 = vsel %vm43, %v45, %v41
    %v47 = vmul.f32 1.0, %v46
    %v48 = vrcp.pop %v32
    %v49 = vmul.f32 %v32, %v48
    %v50 = vsub.f32 1.0, %v49
    %v51 = vmul.f32 %v48, %v50
    %v52 = vadd.f32 %v48, %v51
    %vm53 = vweird.f32 %v32
    %vm54 = vweird.f32 %v48
    %vm55 = vmor %vm53, %vm54
    %v56 = vsel %vm55, %v48, %v52
    %v57 = vand.u32 2147483647, %v32
    %vm58 = vcmp.eq.f32.partialorder %v57, 8.507059e+37
    %v59 = vand.u32 %v32, 2147483648
    %v60 = vor.u32 1.1754944e-38, %v59
    %v61 = vsel %vm58, %v60, %v56
    %v62 = vmul.f32 1.0, %v61
    %v63 = vmul.f32 %v47, 1.0614054
    %v64 = vmul.f32 %v62, 1.0614054
    %v65 = vadd.f32 %v63, -1.4531521
    %v66 = vadd.f32 %v64, -1.4531521
    %v67 = vmul.f32 %v47, %v65
    %v68 = vmul.f32 %v62, %v66
    %v69 = vadd.f32 %v67, 1.4214138
    %v70 = vadd.f32 %v68, 1.4214138
    %v71 = vmul.f32 %v47, %v69
    %v72 = vmul.f32 %v62, %v70
    %v73 = vadd.f32 %v71, -0.28449672
    %v74 = vadd.f32 %v72, -0.28449672
    %v75 = vmul.f32 %v47, %v73
    %v76 = vmul.f32 %v62, %v74
    %v77 = vadd.f32 %v75, 0.2548296
    %v78 = vadd.f32 %v76, 0.2548296
    %v79 = vmul.f32 %v47, %v77
    %v80 = vmul.f32 %v62, %v78
    %v81 = vsub.f32 0.0, %v27
    %v82 = vsub.f32 0.0, %v28
    %v83 = vmul.f32 %v81, %v27
    %v84 = vmul.f32 %v82, %v28
    %v85 = vmul.f32 %v83, 1.442695
    %v86 = vpow.pop %v85
    %v87 = vmul.f32 %v84, 1.442695
    %v88 = vpow.pop %v87
    %v89 = vmul.f32 %v79, %v86
    %v90 = vmul.f32 %v80, %v88
    %v91 = vsub.f32 1.0, %v89
    %v92 = vsub.f32 1.0, %v90
    %vm93 = vcmp.lt.f32.partialorder %v25, 0.0
    %vm94 = vcmp.lt.f32.partialorder %v26, 0.0
    %v95 = vsub.f32 0.0, %v91
    %v96 = vsub.f32 0.0, %v92
    %v97 = vsel %vm93, %v95, %v91
    %v98 = vsel %vm94, %v96, %v92
    %v99 = vmul.f32 %v23, 0.5
    %v100 = vmul.f32 %v24, 0.5
    %v101 = vadd.f32 %v97, 1.0
    %v102 = vadd.f32 %v98, 1.0
    %v103 = vmul.f32 %v99, %v101
    %v104 = vmul.f32 %v100, %v102
    %v105 = vmax.f32 %v103, -0.5
    %v106 = vmax.f32 %v104, -0.5
    %v107 = vmin.f32 %v105, 2.0
    %v108 = vmin.f32 %v106, 2.0
    %109 = vst [vmem:[#allocation5] sm:$0xff] %v107
    %110 = vst [vmem:[#allocation5 + $0x8] sm:$0xff] %v108
    // Predicated region
    $region10: #{tpu_custom_call.1} parent=1 // pred_check
      _
    $region11: #{tpu_custom_call.1} parent=1 // pred_check_branch
      %112 = sbr.rel (0) target = $region13
    $region12: #{tpu_custom_call.1} parent=1 // pred_region
      %114 = vsyncadd [#allocation4], 0
      %s116 = sshll.u32 [#allocation5], 4
      %s117 = int_to_ptr.vmem [resolvable:$true] %s116
      %s118 = sshll.u32 %s1, 4
      %s119 = int_to_ptr.hbm [resolvable:$true] %s118
      %121 = dma.vmem_to_hbm [thread:$0]  %s117, 256, %s119, [#allocation4]
    $region13: #{tpu_custom_call.1} parent=1 // pred_fallthru
      _
    // Predicated region
    $region14: #{tpu_custom_call.1} parent=1 // pred_check
      _
    $region15: #{tpu_custom_call.1} parent=1 // pred_check_branch
      %123 = sbr.rel (0) target = $region17
    $region16: #{tpu_custom_call.1} parent=1 // pred_region
      %125 = dma.done [#allocation4], 256
    $region17: #{tpu_custom_call.1} parent=1 // pred_fallthru
      _
    %126 = vsyncpa [#allocation3], 1
    %127 = vsyncpa [#allocation4], 1

</llo_original>
